<compile_context>
chip_gen: v5e
topology: v5e:2x2
jax: 0.10.0
libtpu: 0.0.40
codegen_flags: <defaults>
</compile_context>

<pallas_src>
import jax
import jax.numpy as jnp
from jax.experimental import pallas as pl
from jax.experimental.pallas import tpu as pltpu

LANE = 128     # TPU lane width; batch tiles must be a multiple of this.
CHUNK = 256    # in-kernel lane chunk: h = (64, CHUNK) f32 = 16 vregs.


def _round_up(n, m):
    return ((n + m - 1) // m) * m


def dqn_kernel(xT_ref, w1_ref, b1_ref, w2_ref, b2_ref, outT_ref):
    # Feature-major ("batch on lanes") layout:
    #   xT   : (4,  TB)  one batch tile, features on sublanes
    #   w1   : (64, 4)   == torch lin1.weight (out, in)
    #   b1   : (64, 1)
    #   w2   : (9,  64)  == torch head.weight
    #   b2   : (9,  1)
    #   outT : (9,  TB)
    tb = xT_ref.shape[-1]
    ch = min(CHUNK, tb)

    w1 = w1_ref[...]
    b1 = b1_ref[...]
    w2 = w2_ref[...]
    b2 = b2_ref[...]

    # Fused two-layer compute per lane chunk: h stays in registers instead of
    # materializing a (64, tb) f32 intermediate through VMEM.  Offsets are
    # static (Python loop over a trace-time-known tile width), so slices are
    # free and fully unrolled for the scheduler.
    for c0 in range(0, tb, ch):
        cw = min(ch, tb - c0)                             # multiple of 128
        xc = xT_ref[:, c0:c0 + cw]                        # (4, cw)

        # lin1 + ReLU: (64,4) @ (4,cw) -> (64,cw)
        h = jnp.dot(w1, xc, preferred_element_type=jnp.float32) + b1
        h = jnp.maximum(h, 0.0)
        # NOTE: if profiling shows the MXU feed / result-pop slot binding on
        # v6e, this K=4 contraction can be done as 4 VPU FMAs instead.

        # head: (9,64) @ (64,cw) -> (9,cw)
        logits = jnp.dot(w2, h, preferred_element_type=jnp.float32) + b2

        # Numerically stable softmax over the feature axis (9 sublanes).
        m = jnp.max(logits, axis=0, keepdims=True)        # (1, cw)
        e = jnp.exp(logits - m)                           # (9, cw)
        denom = jnp.sum(e, axis=0, keepdims=True)         # (1, cw)
        # Exact normalization: rows sum to 1 to f32 roundoff.  (approx-only
        # vrcp drifted past 1e-3 and failed the previous correctness check.)
        inv = 1.0 / denom                                 # (1, cw)
        outT_ref[:, c0:c0 + cw] = (e * inv).astype(outT_ref.dtype)


def _pick_tile(batch, tb_req):
    """Tile size (multiple of 128), tile count (even when >1), padded batch."""
    bp_min = _round_up(batch, LANE)
    tb = _round_up(max(LANE, min(tb_req, bp_min)), LANE)
    n_tiles = pl.cdiv(batch, tb)
    if n_tiles > 1 and n_tiles % 2 == 1:
        # Even tile count so v7x's two TensorCores both get work.
        n_tiles += 1
        tb = _round_up(pl.cdiv(batch, n_tiles), LANE)
    bp = n_tiles * tb
    return tb, n_tiles, bp


def dqn_forward_fm(xT, w1, b1, w2, b2, *, tb=32768):
    """Feature-major path: xT (4,B) f32 -> (9,B) softmax probabilities.

    No wrapper-side transposes; this is the zero-extra-HBM-pass entry point.
    Weights stay in torch layout: w1 (64,4), b1 (64,), w2 (9,64), b2 (9,).
    """
    _, B = xT.shape
    tb, n_tiles, Bp = _pick_tile(B, tb)

    xT = xT.astype(jnp.float32)
    if Bp != B:
        xT = jnp.pad(xT, ((0, 0), (0, Bp - B)))           # only when unaligned

    w1c = w1.astype(jnp.float32)                          # (64, 4)
    b1c = b1.reshape(64, 1).astype(jnp.float32)
    w2c = w2.astype(jnp.float32)                          # (9, 64)
    b2c = b2.reshape(9, 1).astype(jnp.float32)

    outT = pl.pallas_call(
        dqn_kernel,
        out_shape=jax.ShapeDtypeStruct((9, Bp), jnp.float32),
        grid=(n_tiles,),
        in_specs=[
            pl.BlockSpec((4, tb), lambda i: (0, i)),      # streamed batch tile
            pl.BlockSpec((64, 4), lambda i: (0, 0)),      # weights/biases:
            pl.BlockSpec((64, 1), lambda i: (0, 0)),      #   constant block
            pl.BlockSpec((9, 64), lambda i: (0, 0)),      #   index -> stay
            pl.BlockSpec((9, 1), lambda i: (0, 0)),       #   VMEM-resident
        ],
        out_specs=pl.BlockSpec((9, tb), lambda i: (0, i)),
        compiler_params=pltpu.CompilerParams(
            dimension_semantics=("parallel",),            # v7x: 2 TCs split tiles
        ),
    )(xT, w1c, b1c, w2c, b2c)

    return outT if Bp == B else outT[:, :B]


def dqn_forward(x, w1, b1, w2, b2, *, tb=32768):
    """PyTorch-facing path: x (B,4) -> (B,9), matching DQNNet.forward.

    The transposes here are layout plumbing outside the kernel; feature-major
    producers/consumers should call dqn_forward_fm directly to avoid the two
    extra HBM passes.
    """
    outT = dqn_forward_fm(jnp.asarray(x, jnp.float32).T, w1, b1, w2, b2, tb=tb)
    return outT.T


def dqn_reference(x, w1, b1, w2, b2):
    h = jnp.maximum(x @ w1.T + b1, 0.0)
    logits = h @ w2.T + b2
    return jax.nn.softmax(logits, axis=-1)


def init_params(key):
    # Deterministic init mimicking torch.nn.Linear default:
    # U(-1/sqrt(fan_in), 1/sqrt(fan_in)); weights in torch (out, in) layout.
    k1, k2, k3, k4 = jax.random.split(key, 4)
    bound1 = 1.0 / jnp.sqrt(4.0)
    bound2 = 1.0 / jnp.sqrt(64.0)
    w1 = jax.random.uniform(k1, (64, 4), jnp.float32, -bound1, bound1)
    b1 = jax.random.uniform(k2, (64,), jnp.float32, -bound1, bound1)
    w2 = jax.random.uniform(k3, (9, 64), jnp.float32, -bound2, bound2)
    b2 = jax.random.uniform(k4, (9,), jnp.float32, -bound2, bound2)
    return w1, b1, w2, b2


if __name__ == "__main__":
    key = jax.random.PRNGKey(0)
    kp, kx1, kx2 = jax.random.split(key, 3)
    w1, b1, w2, b2 = init_params(kp)

    # 1) Small batch, PyTorch-facing layout (single grid step).
    B = 8
    x = jax.random.normal(kx1, (B, 4), jnp.float32)
    out = jax.block_until_ready(dqn_forward(x, w1, b1, w2, b2))
    ref = dqn_reference(x, w1, b1, w2, b2)
    assert out.shape == (B, 9)
    # Exact normalization -> rows sum to 1 to f32 roundoff.
    assert bool(jnp.all(jnp.abs(jnp.sum(out, axis=-1) - 1.0) < 1e-4))
    # 2e-3 tolerance covers possible reduced-precision MXU passes in the
    # XLA reference matmuls; the values themselves agree much tighter.
    assert bool(jnp.max(jnp.abs(out - ref)) < 2e-3)

    # 2) Feature-major path, multi-tile grid (2 tiles of 128), no wrapper
    #    layout passes and no batch padding.
    B2 = 256
    xT2 = jax.random.normal(kx2, (4, B2), jnp.float32)
    outT2 = jax.block_until_ready(dqn_forward_fm(xT2, w1, b1, w2, b2, tb=128))
    ref2 = dqn_reference(xT2.T, w1, b1, w2, b2)
    assert outT2.shape == (9, B2)
    assert bool(jnp.all(jnp.abs(jnp.sum(outT2, axis=0) - 1.0) < 1e-4))
    assert bool(jnp.max(jnp.abs(outT2.T - ref2)) < 2e-3)

    # 3) Unaligned batch + non-128-multiple tb request (exercises the rounding
    #    and padding paths the review flagged).
    B3 = 300
    x3 = jax.random.normal(kx1, (B3, 4), jnp.float32)
    out3 = jax.block_until_ready(dqn_forward(x3, w1, b1, w2, b2, tb=200))
    ref3 = dqn_reference(x3, w1, b1, w2, b2)
    assert out3.shape == (B3, 9)
    assert bool(jnp.max(jnp.abs(out3 - ref3)) < 2e-3)

    print("KERNEL_OK")
</pallas_src>

<mosaic_0001>
module attributes {stable_mosaic.version = 11 : i64} {
  func.func @dqn_kernel(%arg0: i32, %arg1: memref<4x128xf32, #tpu.memory_space<vmem>>, %arg2: memref<64x4xf32, #tpu.memory_space<vmem>>, %arg3: memref<64x1xf32, #tpu.memory_space<vmem>>, %arg4: memref<9x64xf32, #tpu.memory_space<vmem>>, %arg5: memref<9x1xf32, #tpu.memory_space<vmem>>, %arg6: memref<9x128xf32, #tpu.memory_space<vmem>>) attributes {dimension_semantics = [#tpu.dimension_semantics<parallel>], iteration_bounds = array<i64: 1>, scalar_prefetch = 0 : i64, scratch_operands = 0 : i64, tpu.core_type = #tpu.core_type<tc>, window_params = [{transform_indices = @transform_0, window_bounds = array<i64: 4, 128>}, {pipeline_mode = #tpu.pipeline_mode<synchronous>, transform_indices = @transform_1, window_bounds = array<i64: 64, 4>}, {pipeline_mode = #tpu.pipeline_mode<synchronous>, transform_indices = @transform_2, window_bounds = array<i64: 64, 1>}, {pipeline_mode = #tpu.pipeline_mode<synchronous>, transform_indices = @transform_3, window_bounds = array<i64: 9, 64>}, {pipeline_mode = #tpu.pipeline_mode<synchronous>, transform_indices = @transform_4, window_bounds = array<i64: 9, 1>}, {transform_indices = @transform_5, window_bounds = array<i64: 9, 128>}]} {
    %c0 = arith.constant 0 : index
    %c0_0 = arith.constant 0 : index
    %0 = vector.load %arg2[%c0, %c0_0] : memref<64x4xf32, #tpu.memory_space<vmem>>, vector<64x4xf32>
    %c0_1 = arith.constant 0 : index
    %c0_2 = arith.constant 0 : index
    %1 = vector.load %arg3[%c0_1, %c0_2] : memref<64x1xf32, #tpu.memory_space<vmem>>, vector<64x1xf32>
    %c0_3 = arith.constant 0 : index
    %c0_4 = arith.constant 0 : index
    %2 = vector.load %arg4[%c0_3, %c0_4] : memref<9x64xf32, #tpu.memory_space<vmem>>, vector<9x64xf32>
    %c0_5 = arith.constant 0 : index
    %c0_6 = arith.constant 0 : index
    %3 = vector.load %arg5[%c0_5, %c0_6] : memref<9x1xf32, #tpu.memory_space<vmem>>, vector<9x1xf32>
    %c0_7 = arith.constant 0 : index
    %c0_8 = arith.constant 0 : index
    %4 = vector.load %arg1[%c0_7, %c0_8] : memref<4x128xf32, #tpu.memory_space<vmem>>, vector<4x128xf32>
    %cst = arith.constant dense<0.000000e+00> : vector<64x128xf32>
    %5 = tpu.matmul %0, %4, %cst {dimension_numbers = #tpu.dot_dimension_numbers<[1], [0], [0], [1], [0, 0, 1, 1], [], []>} : vector<64x4xf32>, vector<4x128xf32>, vector<64x128xf32> -> vector<64x128xf32>
    %6 = vector.broadcast %1 : vector<64x1xf32> to vector<64x128xf32>
    %7 = arith.addf %5, %6 : vector<64x128xf32>
    %cst_9 = arith.constant 0.000000e+00 : f32
    %8 = vector.broadcast %cst_9 : f32 to vector<64x128xf32>
    %9 = arith.maximumf %7, %8 : vector<64x128xf32>
    %cst_10 = arith.constant dense<0.000000e+00> : vector<9x128xf32>
    %10 = tpu.matmul %2, %9, %cst_10 {dimension_numbers = #tpu.dot_dimension_numbers<[1], [0], [0], [1], [0, 0, 1, 1], [], []>} : vector<9x64xf32>, vector<64x128xf32>, vector<9x128xf32> -> vector<9x128xf32>
    %11 = vector.broadcast %3 : vector<9x1xf32> to vector<9x128xf32>
    %12 = arith.addf %10, %11 : vector<9x128xf32>
    %cst_11 = arith.constant dense<0xFF800000> : vector<128xf32>
    %13 = vector.multi_reduction <maximumf>, %12, %cst_11 [0] : vector<9x128xf32> to vector<128xf32>
    %14 = vector.shape_cast %13 : vector<128xf32> to vector<1x128xf32>
    %15 = vector.broadcast %14 : vector<1x128xf32> to vector<9x128xf32>
    %16 = arith.subf %12, %15 : vector<9x128xf32>
    %17 = math.exp %16 : vector<9x128xf32>
    %cst_12 = arith.constant dense<0.000000e+00> : vector<128xf32>
    %18 = vector.multi_reduction <add>, %17, %cst_12 [0] : vector<9x128xf32> to vector<128xf32>
    %19 = vector.shape_cast %18 : vector<128xf32> to vector<1x128xf32>
    %cst_13 = arith.constant 1.000000e+00 : f32
    %20 = vector.broadcast %cst_13 : f32 to vector<1x128xf32>
    %21 = arith.divf %20, %19 : vector<1x128xf32>
    %22 = vector.broadcast %21 : vector<1x128xf32> to vector<9x128xf32>
    %23 = arith.mulf %17, %22 : vector<9x128xf32>
    %c0_14 = arith.constant 0 : index
    %c0_15 = arith.constant 0 : index
    %24 = vector.load %arg6[%c0_14, %c0_15] : memref<9x128xf32, #tpu.memory_space<vmem>>, vector<9x128xf32>
    tpu.vector_store %arg6[%c0_14, %c0_15], %23 {strides = array<i32>} : memref<9x128xf32, #tpu.memory_space<vmem>>, vector<9x128xf32>,
    return
  }
  func.func @transform_0(%arg0: i32) -> (i32, i32) {
    %c0_i32 = arith.constant 0 : i32
    %c0_i32_0 = arith.constant 0 : i32
    return %c0_i32, %arg0 : i32, i32
  }
  func.func @transform_1(%arg0: i32) -> (i32, i32) {
    %c0_i32 = arith.constant 0 : i32
    %c0_i32_0 = arith.constant 0 : i32
    %c0_i32_1 = arith.constant 0 : i32
    return %c0_i32, %c0_i32_0 : i32, i32
  }
  func.func @transform_2(%arg0: i32) -> (i32, i32) {
    %c0_i32 = arith.constant 0 : i32
    %c0_i32_0 = arith.constant 0 : i32
    %c0_i32_1 = arith.constant 0 : i32
    return %c0_i32, %c0_i32_0 : i32, i32
  }
  func.func @transform_3(%arg0: i32) -> (i32, i32) {
    %c0_i32 = arith.constant 0 : i32
    %c0_i32_0 = arith.constant 0 : i32
    %c0_i32_1 = arith.constant 0 : i32
    return %c0_i32, %c0_i32_0 : i32, i32
  }
  func.func @transform_4(%arg0: i32) -> (i32, i32) {
    %c0_i32 = arith.constant 0 : i32
    %c0_i32_0 = arith.constant 0 : i32
    %c0_i32_1 = arith.constant 0 : i32
    return %c0_i32, %c0_i32_0 : i32, i32
  }
  func.func @transform_5(%arg0: i32) -> (i32, i32) {
    %c0_i32 = arith.constant 0 : i32
    %c0_i32_0 = arith.constant 0 : i32
    return %c0_i32, %arg0 : i32, i32
  }
}

</mosaic_0001>

<llo_original>
// kernel: tpu_custom_call.1
$region0: #{tpu_custom_call.1}
  #allocation0 [shape = 'u32[]', space=smem, size = 0x4, offset = 0x4, fixed_abs, tag = 'smem constant byte address 0x4 - core index']
  #allocation1 [shape = 'u32[72,128]{1,0:T(1,128)}', space=vmem, size = 0x9000, scoped, tag = 'internal scratch']
  %s0 = inlined_call_operand.vmem [shape: f32[4,128], index: 0, kind: input, shape index: {}]
  %s1 = inlined_call_operand.vmem [shape: f32[64,4], index: 1, kind: input, shape index: {}]
  %s2 = inlined_call_operand.vmem [shape: f32[64,1], index: 2, kind: input, shape index: {}]
  %s3 = inlined_call_operand.vmem [shape: f32[9,64], index: 3, kind: input, shape index: {}]
  %s4 = inlined_call_operand.vmem [shape: f32[9,1], index: 4, kind: input, shape index: {}]
  %s5 = inlined_call_operand.hbm [shape: f32[9,128], index: 5, kind: output, shape index: {}]
  %s6 = sld [smem:[#allocation0]]
  $region30: #{tpu_custom_call.1} parent=0
    _
  %s8 = ssub.s32 1, %s6
  %s9 = scalar_select 0, %s8, %s6
  $region1: #{tpu_custom_call.1} parent=0
    #allocation2 [shape = 'u8[8192]{0}', space=vmem, size = 0x2000, scoped, tag = 'output window, operand 0, single buffered']
    #allocation3 [shape = 's32[1]{0}', space=sflag, size = 0x4, scoped, tag = 'scoped memory for tpu_custom_call.1']
    %10 = vsyncpa [#allocation3], 0
    // Predicated region
    $region2: #{tpu_custom_call.1} parent=1 // pred_check
      _
    $region3: #{tpu_custom_call.1} parent=1 // pred_check_branch
      %12 = sbr.rel (0) target = $region5
    $region4: #{tpu_custom_call.1} parent=1 // pred_region
      _
    $region5: #{tpu_custom_call.1} parent=1 // pred_fallthru
      _
    // Predicated region
    $region6: #{tpu_custom_call.1} parent=1 // pred_check
      _
    $region7: #{tpu_custom_call.1} parent=1 // pred_check_branch
      %14 = sbr.rel (0) target = $region9
    $region8: #{tpu_custom_call.1} parent=1 // pred_region
      _
    $region9: #{tpu_custom_call.1} parent=1 // pred_fallthru
      _
    // Predicated region
    $region10: #{tpu_custom_call.1} parent=1 // pred_check
      _
    $region11: #{tpu_custom_call.1} parent=1 // pred_check_branch
      %16 = sbr.rel (0) target = $region13
    $region12: #{tpu_custom_call.1} parent=1 // pred_region
      _
    $region13: #{tpu_custom_call.1} parent=1 // pred_fallthru
      _
    // Predicated region
    $region14: #{tpu_custom_call.1} parent=1 // pred_check
      _
    $region15: #{tpu_custom_call.1} parent=1 // pred_check_branch
      %18 = sbr.rel (0) target = $region17
    $region16: #{tpu_custom_call.1} parent=1 // pred_region
      _
    $region17: #{tpu_custom_call.1} parent=1 // pred_fallthru
      _
    // Predicated region
    $region18: #{tpu_custom_call.1} parent=1 // pred_check
      _
    $region19: #{tpu_custom_call.1} parent=1 // pred_check_branch
      %20 = sbr.rel (0) target = $region21
    $region20: #{tpu_custom_call.1} parent=1 // pred_region
      _
    $region21: #{tpu_custom_call.1} parent=1 // pred_fallthru
      _
    %v21 = vld [vmem:[%s1] sm:$0xff]
    %v22 = vld [vmem:[%s1 + $0x8] sm:$0xff]
    %v23 = vld [vmem:[%s1 + $0x10] sm:$0xff]
    %v24 = vld [vmem:[%s1 + $0x18] sm:$0xff]
    %v25 = vld [vmem:[%s1 + $0x20] sm:$0xff]
    %v26 = vld [vmem:[%s1 + $0x28] sm:$0xff]
    %v27 = vld [vmem:[%s1 + $0x30] sm:$0xff]
    %v28 = vld [vmem:[%s1 + $0x38] sm:$0xff]
    %v29 = vld [vmem:[%s2] sm:$0xff]
    %v30 = vld [vmem:[%s2 + $0x8] sm:$0xff]
    %v31 = vld [vmem:[%s2 + $0x10] sm:$0xff]
    %v32 = vld [vmem:[%s2 + $0x18] sm:$0xff]
    %v33 = vld [vmem:[%s2 + $0x20] sm:$0xff]
    %v34 = vld [vmem:[%s2 + $0x28] sm:$0xff]
    %v35 = vld [vmem:[%s2 + $0x30] sm:$0xff]
    %v36 = vld [vmem:[%s2 + $0x38] sm:$0xff]
    %v37 = vld [vmem:[%s3] sm:$0xff]
    %v38 = vld [vmem:[%s3 + $0x8] sm:$0x1]
    %v39 = vld [vmem:[%s4] sm:$0xff]
    %v40 = vld [vmem:[%s4 + $0x8] sm:$0x1]
    %v41 = vld [vmem:[%s0] sm:$0xf]
    %43 = vset.pattern.permute.xlu0 0
    %44 = vperm.xlu0 %43, %v29
    %v45 = vpop.permute.xlu0 %44
    %48 = vset.pattern.permute.xlu0 0
    %49 = vperm.xlu0 %48, %v30
    %v50 = vpop.permute.xlu0 %49
    %53 = vset.pattern.permute.xlu0 0
    %54 = vperm.xlu0 %53, %v31
    %v55 = vpop.permute.xlu0 %54
    %58 = vset.pattern.permute.xlu0 0
    %59 = vperm.xlu0 %58, %v32
    %v60 = vpop.permute.xlu0 %59
    %63 = vset.pattern.permute.xlu0 0
    %64 = vperm.xlu0 %63, %v33
    %v65 = vpop.permute.xlu0 %64
    %68 = vset.pattern.permute.xlu0 0
    %69 = vperm.xlu0 %68, %v34
    %v70 = vpop.permute.xlu0 %69
    %73 = vset.pattern.permute.xlu0 0
    %74 = vperm.xlu0 %73, %v35
    %v75 = vpop.permute.xlu0 %74
    %78 = vset.pattern.permute.xlu0 0
    %79 = vperm.xlu0 %78, %v36
    %v80 = vpop.permute.xlu0 %79
    %vm82 = vcmask 31744
    %v84 = vsel %vm82, %v21, 0
    %v87 = vsel %vm82, %v22, 0
    %v90 = vsel %vm82, %v23, 0
    %v93 = vsel %vm82, %v24, 0
    %v96 = vsel %vm82, %v25, 0
    %v99 = vsel %vm82, %v26, 0
    %v102 = vsel %vm82, %v27, 0
    %v105 = vsel %vm82, %v28, 0
    %vm107 = vcmask 1043456
    %v109 = vsel %vm107, %v41, 0
    %111 = vmatpush.msra.mxu0 0.0
    %112 = vmatpush.msra.mxu0 0.0
    %113 = vmatpush.msra.mxu0 0.0
    %114 = vmatpush.msra.mxu0 0.0
    %115 = vmatpush.msra.mxu0 0.0
    %116 = vmatpush.msra.mxu0 0.0
    %117 = vmatpush.msra.mxu0 0.0
    %118 = vmatpush.msra.mxu0 0.0
    %119 = vmatpush.msra.mxu0 0.0
    %120 = vmatpush.msra.mxu0 0.0
    %121 = vmatpush.msra.mxu0 0.0
    %122 = vmatpush.msra.mxu0 0.0
    %123 = vmatpush.msra.mxu0 0.0
    %124 = vmatpush.msra.mxu0 0.0
    %125 = vmatpush.msra.mxu0 0.0
    %126 = vmatpush.msra.mxu0 %v109
    %127 = vmatmul.f32.gmra.mxu0 %v84
    %v128 = vpop.f32.mrf.mxu0
    %v129 = vadd.f32 %v45, %v128
    %130 = vmatmul.f32.gmra.mxu0 %v87
    %v131 = vpop.f32.mrf.mxu0
    %v132 = vadd.f32 %v50, %v131
    %133 = vmatmul.f32.gmra.mxu0 %v90
    %v134 = vpop.f32.mrf.mxu0
    %v135 = vadd.f32 %v55, %v134
    %136 = vmatmul.f32.gmra.mxu0 %v93
    %v137 = vpop.f32.mrf.mxu0
    %v138 = vadd.f32 %v60, %v137
    %139 = vmatmul.f32.gmra.mxu0 %v96
    %v140 = vpop.f32.mrf.mxu0
    %v141 = vadd.f32 %v65, %v140
    %142 = vmatmul.f32.gmra.mxu0 %v99
    %v143 = vpop.f32.mrf.mxu0
    %v144 = vadd.f32 %v70, %v143
    %145 = vmatmul.f32.gmra.mxu0 %v102
    %v146 = vpop.f32.mrf.mxu0
    %v147 = vadd.f32 %v75, %v146
    %148 = vmatmul.f32.gmra.mxu0 %v105
    %v149 = vpop.f32.mrf.mxu0
    %v150 = vadd.f32 %v80, %v149
    %151 = vdwg.mxu0
    %v152 = vmax.f32 %v129, 0.0
    %v153 = vmax.f32 %v132, 0.0
    %v154 = vmax.f32 %v135, 0.0
    %v155 = vmax.f32 %v138, 0.0
    %v156 = vmax.f32 %v141, 0.0
    %v157 = vmax.f32 %v144, 0.0
    %v158 = vmax.f32 %v147, 0.0
    %v159 = vmax.f32 %v150, 0.0
    %161 = vset.pattern.permute.xlu0 0
    %162 = vperm.xlu0 %161, %v39
    %v163 = vpop.permute.xlu0 %162
    %166 = vset.pattern.permute.xlu0 0
    %167 = vperm.xlu0 %166, %v40
    %v168 = vpop.permute.xlu0 %167
    %vm170 = vcmask 523264
    %v172 = vsel %vm170, %v37, 0
    %v175 = vsel %vm170, %v38, 0
    %177 = vmatpush.msra.mxu0 0.0
    %178 = vmatpush.msra.mxu0 0.0
    %179 = vmatpush.msra.mxu0 0.0
    %180 = vmatpush.msra.mxu0 0.0
    %181 = vmatpush.msra.mxu0 0.0
    %182 = vmatpush.msra.mxu0 0.0
    %183 = vmatpush.msra.mxu0 0.0
    %184 = vmatpush.msra.mxu0 0.0
    %185 = vmatpush.msra.mxu0 %v159
    %186 = vmatpush.msra.mxu0 %v158
    %187 = vmatpush.msra.mxu0 %v157
    %188 = vmatpush.msra.mxu0 %v156
    %189 = vmatpush.msra.mxu0 %v155
    %190 = vmatpush.msra.mxu0 %v154
    %191 = vmatpush.msra.mxu0 %v153
    %192 = vmatpush.msra.mxu0 %v152
    %193 = vmatmul.f32.gmra.mxu0 %v172
    %v194 = vpop.f32.mrf.mxu0
    %v195 = vadd.f32 %v163, %v194
    %196 = vmatmul.f32.gmra.mxu0 %v175
    %v197 = vpop.f32.mrf.mxu0
    %v198 = vadd.f32 %v168, %v197
    %199 = vdwg.mxu0
    %vm200 = vcmask 1040384
    %v201 = vsel %vm200, %v198, -inf
    %v202 = vmax.f32 %v195, %v201
    %v203 = vrot.slane %v202, 4
    %v204 = vmax.f32 %v202, %v203
    %v205 = vrot.slane %v204, 2
    %v206 = vmax.f32 %v204, %v205
    %v207 = vrot.slane %v206, 1
    %v208 = vmax.f32 %v206, %v207
    %v209 = vsub.f32 %v195, %v208
    %v210 = vsub.f32 %v198, %v208
    %v211 = vmul.f32 %v209, 1.442695
    %v212 = vpow.pop %v211
    %v213 = vmul.f32 %v210, 1.442695
    %v214 = vpow.pop %v213
    %v215 = vsel %vm200, %v214, 0.0
    %v216 = vadd.f32 %v212, %v215
    %v217 = vrot.slane %v216, 4
    %v218 = vadd.f32 %v216, %v217
    %v219 = vrot.slane %v218, 2
    %v220 = vadd.f32 %v218, %v219
    %v221 = vrot.slane %v220, 1
    %v222 = vadd.f32 %v220, %v221
    %v223 = vrcp.pop %v222
    %v224 = vmul.f32 %v222, %v223
    %v225 = vsub.f32 1.0, %v224
    %v226 = vmul.f32 %v223, %v225
    %v227 = vadd.f32 %v223, %v226
    %vm228 = vweird.f32 %v222
    %vm229 = vweird.f32 %v223
    %vm230 = vmor %vm228, %vm229
    %v231 = vsel %vm230, %v223, %v227
    %v232 = vand.u32 2147483647, %v222
    %vm233 = vcmp.eq.f32.partialorder %v232, 8.507059e+37
    %v234 = vand.u32 %v222, 2147483648
    %v235 = vor.u32 1.1754944e-38, %v234
    %v236 = vsel %vm233, %v235, %v231
    %v237 = vmul.f32 1.0, %v236
    %v238 = vmul.f32 %v212, %v237
    %v239 = vmul.f32 %v214, %v237
    %240 = vst [vmem:[#allocation2] sm:$0xff] %v238
    %241 = vst [vmem:[#allocation2 + $0x8] sm:$0x1] %v239
    // Predicated region
    $region22: #{tpu_custom_call.1} parent=1 // pred_check
      _
    $region23: #{tpu_custom_call.1} parent=1 // pred_check_branch
      %243 = sbr.rel (0) target = $region25
    $region24: #{tpu_custom_call.1} parent=1 // pred_region
      %245 = vsyncadd [#allocation3], 0
      %s246 = sshll.u32 [#allocation2], 4
      %s247 = int_to_ptr.vmem [resolvable:$true] %s246
      %s248 = sshll.u32 %s5, 4
      %s249 = int_to_ptr.hbm [resolvable:$true] %s248
      %254 = dma.vmem_to_hbm [thread:$0]  %s247, 256, %s249, [#allocation3], 128, 128, 8
    $region25: #{tpu_custom_call.1} parent=1 // pred_fallthru
      _
    // Predicated region
    $region26: #{tpu_custom_call.1} parent=1 // pred_check
      _
    $region27: #{tpu_custom_call.1} parent=1 // pred_check_branch
      %256 = sbr.rel (0) target = $region29
    $region28: #{tpu_custom_call.1} parent=1 // pred_region
      %258 = dma.done [#allocation3], 256
    $region29: #{tpu_custom_call.1} parent=1 // pred_fallthru
      _
    %259 = vsyncpa [#allocation3], 1

</llo_original>
